<compile_context>
chip_gen: v5e
topology: v5e:2x2
jax: 0.10.0
libtpu: 0.0.40
codegen_flags: <defaults>
</compile_context>

<pallas_src>
import functools
import math

import jax
import jax.numpy as jnp
from jax import lax
from jax.experimental import pallas as pl
from jax.experimental.pallas import tpu as pltpu


# ------------------------------- tiling utils ------------------------------- #

def _pick_tile(dim, candidates):
    """Largest candidate tile that evenly divides `dim`; else fall back to the full dim
    (full-dim blocks always satisfy the (8, 128) block constraint)."""
    for c in candidates:
        if c <= dim and dim % c == 0:
            return c
    return dim


# --------------------------- tiled linear: y = xW + b ----------------------- #

def _linear_kernel(x_ref, w_ref, b_ref, o_ref, acc_ref):
    k = pl.program_id(2)

    @pl.when(k == 0)
    def _():
        acc_ref[...] = jnp.zeros_like(acc_ref)

    acc_ref[...] += jnp.dot(x_ref[...], w_ref[...],
                            preferred_element_type=jnp.float32)

    @pl.when(k == pl.num_programs(2) - 1)
    def _():
        o_ref[...] = (acc_ref[...] + b_ref[...].astype(jnp.float32)).astype(o_ref.dtype)


def _pallas_linear(x2d, w, b):
    """x2d: (M, K), w: (K, N), b: (N,) -> (M, N). Tiled, pipelined, megacore-friendly."""
    M, K = x2d.shape
    N = w.shape[1]
    # Tile caps keep (2 inputs x 2 pipeline buffers + acc + out) well under the 32 MiB
    # default scoped VMEM even on v7x's 64 MiB VMEM.
    tm = _pick_tile(M, (512, 256, 128))
    tn = _pick_tile(N, (512, 256, 128))
    tk = _pick_tile(K, (1024, 512, 256, 128))

    cost = pl.CostEstimate(
        flops=2 * M * N * K + M * N,
        transcendentals=0,
        bytes_accessed=4 * (M * K + K * N + M * N + N),
    )

    return pl.pallas_call(
        _linear_kernel,
        out_shape=jax.ShapeDtypeStruct((M, N), x2d.dtype),
        grid=(M // tm, N // tn, K // tk),
        in_specs=[
            pl.BlockSpec((tm, tk), lambda i, j, k: (i, k)),
            pl.BlockSpec((tk, tn), lambda i, j, k: (k, j)),
            pl.BlockSpec((1, tn), lambda i, j, k: (0, j)),
        ],
        out_specs=pl.BlockSpec((tm, tn), lambda i, j, k: (i, j)),
        scratch_shapes=[pltpu.VMEM((tm, tn), jnp.float32)],
        compiler_params=pltpu.CompilerParams(
            dimension_semantics=("parallel", "parallel", "arbitrary")),
        cost_estimate=cost,
    )(x2d, w, b.reshape(1, N))


# ------------------------ attention (all heads per step) -------------------- #

def _sdpa_all_heads(q, k, v, num_heads, d_k, scale):
    """q: (Sq, d_model), k/v: (Sk, d_model) in VMEM. Returns (Sq, d_model) f32.

    Heads are static lane-axis slices; softmax over the key axis (torch.softmax(dim=-1)).
    Softmax is computed with an exact f32 reciprocal to preserve parity with the
    f32 PyTorch reference (the approx/EUP path is bf16-precision and fails 1e-3 checks).
    """
    outs = []
    for h in range(num_heads):
        sl = slice(h * d_k, (h + 1) * d_k)
        qh = q[:, sl].astype(jnp.float32) * scale          # scale folded into Q
        kh = k[:, sl].astype(jnp.float32)
        vh = v[:, sl].astype(jnp.float32)
        # Contract the d_k axes directly -- no explicit K transpose materialized.
        s = lax.dot_general(qh, kh, (((1,), (1,)), ((), ())),
                            preferred_element_type=jnp.float32)    # (Sq, Sk)
        s = s - jnp.max(s, axis=-1, keepdims=True)
        p = jnp.exp(s)
        inv_l = 1.0 / jnp.sum(p, axis=-1, keepdims=True)   # exact f32 reciprocal
        p = p * inv_l
        outs.append(jnp.dot(p, vh, preferred_element_type=jnp.float32))
    # Lane-dense (Sq, d_model) result -> single full-width store by the caller.
    return jnp.concatenate(outs, axis=-1)


def _mha_kernel(q_ref, k_ref, v_ref, o_ref, *, num_heads, scale):
    d_model = q_ref.shape[-1]
    d_k = d_model // num_heads
    o = _sdpa_all_heads(q_ref[0], k_ref[0], v_ref[0], num_heads, d_k, scale)
    o_ref[0] = o.astype(o_ref.dtype)


def _mha_fused_kernel(qkv_ref, o_ref, *, num_heads, d_model, scale):
    d_k = d_model // num_heads
    q = qkv_ref[0, :, 0:d_model]
    k = qkv_ref[0, :, d_model:2 * d_model]
    v = qkv_ref[0, :, 2 * d_model:3 * d_model]
    o = _sdpa_all_heads(q, k, v, num_heads, d_k, scale)
    o_ref[0] = o.astype(o_ref.dtype)


def _attention_separate(qp, kp, vp, num_heads, scale):
    """Q/K/V projections given separately, all in (B, S, d_model) layout."""
    B, S, d_model = qp.shape
    tq = _pick_tile(S, (512, 256, 128))
    cost = pl.CostEstimate(
        flops=4 * B * S * S * d_model,
        transcendentals=B * num_heads * S * S,
        bytes_accessed=4 * 4 * B * S * d_model,
    )
    return pl.pallas_call(
        functools.partial(_mha_kernel, num_heads=num_heads, scale=scale),
        out_shape=jax.ShapeDtypeStruct((B, S, d_model), qp.dtype),
        grid=(B, S // tq),
        in_specs=[
            pl.BlockSpec((1, tq, d_model), lambda b, i: (b, i, 0)),
            pl.BlockSpec((1, S, d_model), lambda b, i: (b, 0, 0)),
            pl.BlockSpec((1, S, d_model), lambda b, i: (b, 0, 0)),
        ],
        out_specs=pl.BlockSpec((1, tq, d_model), lambda b, i: (b, i, 0)),
        compiler_params=pltpu.CompilerParams(
            dimension_semantics=("parallel", "parallel")),
        cost_estimate=cost,
    )(qp, kp, vp)


def _attention_fused(qkv, num_heads, scale):
    """Fused QKV projection output (B, S, 3*d_model); heads + Q/K/V sliced in-kernel."""
    B, S, d3 = qkv.shape
    d_model = d3 // 3
    cost = pl.CostEstimate(
        flops=4 * B * S * S * d_model,
        transcendentals=B * num_heads * S * S,
        bytes_accessed=4 * (B * S * d3 + B * S * d_model),
    )
    return pl.pallas_call(
        functools.partial(_mha_fused_kernel, num_heads=num_heads,
                          d_model=d_model, scale=scale),
        out_shape=jax.ShapeDtypeStruct((B, S, d_model), qkv.dtype),
        grid=(B,),
        in_specs=[pl.BlockSpec((1, S, d3), lambda b: (b, 0, 0))],
        out_specs=pl.BlockSpec((1, S, d_model), lambda b: (b, 0, 0)),
        compiler_params=pltpu.CompilerParams(dimension_semantics=("parallel",)),
        cost_estimate=cost,
    )(qkv)


# ------------------------------ top-level forward ---------------------------- #

def multi_head_attention(q, k, v, params, num_heads):
    """Pallas implementation of MultiHeadAttention.forward (mask=None)."""
    B, S, d_model = q.shape
    assert d_model % num_heads == 0
    d_k = d_model // num_heads
    scale = 1.0 / math.sqrt(d_k)

    if q is k and k is v:
        # Self-attention: fuse the three projections into one (d, 3d) matmul
        # (x read from HBM once, one pallas_call, 3x wider MXU N dimension).
        w_qkv = jnp.concatenate(
            [params["wq_w"], params["wk_w"], params["wv_w"]], axis=1)
        b_qkv = jnp.concatenate(
            [params["wq_b"], params["wk_b"], params["wv_b"]], axis=0)
        qkv = _pallas_linear(q.reshape(B * S, d_model), w_qkv, b_qkv)
        attn = _attention_fused(qkv.reshape(B, S, 3 * d_model), num_heads, scale)
    else:
        def proj(x, name):
            y = _pallas_linear(x.reshape(B * S, d_model),
                               params[f"{name}_w"], params[f"{name}_b"])
            return y.reshape(B, S, d_model)   # lane-dense; no per-head transpose

        attn = _attention_separate(proj(q, "wq"), proj(k, "wk"), proj(v, "wv"),
                                   num_heads, scale)

    out = _pallas_linear(attn.reshape(B * S, d_model),
                         params["wo_w"], params["wo_b"])
    return out.reshape(B, S, d_model)


def init_params(key, d_model):
    """Deterministic synthetic parameters (weights stored as (in, out))."""
    keys = jax.random.split(key, 8)
    scale = 1.0 / math.sqrt(d_model)
    params = {}
    for i, n in enumerate(["wq", "wk", "wv", "wo"]):
        params[f"{n}_w"] = jax.random.normal(keys[2 * i], (d_model, d_model), jnp.float32) * scale
        params[f"{n}_b"] = jax.random.normal(keys[2 * i + 1], (d_model,), jnp.float32) * 0.01
    return params


# ----------------------------- pure-JAX reference ---------------------------- #

def _reference(q, k, v, params, num_heads):
    B, S, d_model = q.shape
    d_k = d_model // num_heads

    def lin(x, n):
        return x @ params[f"{n}_w"] + params[f"{n}_b"]

    def split(x):
        return x.reshape(B, S, num_heads, d_k).transpose(0, 2, 1, 3)

    qh, kh, vh = split(lin(q, "wq")), split(lin(k, "wk")), split(lin(v, "wv"))
    scores = jnp.einsum("bhqd,bhkd->bhqk", qh, kh) / math.sqrt(d_k)
    w = jax.nn.softmax(scores, axis=-1)
    o = jnp.einsum("bhqk,bhkd->bhqd", w, vh)
    o = o.transpose(0, 2, 1, 3).reshape(B, S, d_model)
    return o @ params["wo_w"] + params["wo_b"]


if __name__ == "__main__":
    B, S, d_model, num_heads = 2, 8, 32, 4

    key = jax.random.PRNGKey(0)
    kq, kk, kv, kp = jax.random.split(key, 4)
    Q = jax.random.normal(kq, (B, S, d_model), jnp.float32)
    K = jax.random.normal(kk, (B, S, d_model), jnp.float32)
    V = jax.random.normal(kv, (B, S, d_model), jnp.float32)
    params = init_params(kp, d_model)

    # Cross-attention path (separate Q/K/V projections).
    out = jax.block_until_ready(multi_head_attention(Q, K, V, params, num_heads))
    ref = _reference(Q, K, V, params, num_heads)
    assert out.shape == (B, S, d_model)
    assert jnp.allclose(out, ref, atol=1e-3, rtol=1e-3), "cross-attention mismatch vs reference"

    # Self-attention path (fused QKV projection kernel).
    out_sa = jax.block_until_ready(multi_head_attention(Q, Q, Q, params, num_heads))
    ref_sa = _reference(Q, Q, Q, params, num_heads)
    assert jnp.allclose(out_sa, ref_sa, atol=1e-3, rtol=1e-3), "self-attention mismatch vs reference"

    print("KERNEL_OK")
</pallas_src>

<mosaic_0001>
module attributes {stable_mosaic.version = 11 : i64} {
  func.func @_linear_kernel(%arg0: i32, %arg1: i32, %arg2: i32, %arg3: memref<16x32xf32, #tpu.memory_space<vmem>>, %arg4: memref<32x32xf32, #tpu.memory_space<vmem>>, %arg5: memref<1x32xf32, #tpu.memory_space<vmem>>, %arg6: memref<16x32xf32, #tpu.memory_space<vmem>>, %arg7: memref<16x32xf32, #tpu.memory_space<vmem>>) attributes {dimension_semantics = [#tpu.dimension_semantics<parallel>, #tpu.dimension_semantics<parallel>, #tpu.dimension_semantics<arbitrary>], iteration_bounds = array<i64: 1, 1, 1>, scalar_prefetch = 0 : i64, scratch_operands = 1 : i64, tpu.core_type = #tpu.core_type<tc>, window_params = [{transform_indices = @transform_0, window_bounds = array<i64: 16, 32>}, {transform_indices = @transform_1, window_bounds = array<i64: 32, 32>}, {transform_indices = @transform_2, window_bounds = array<i64: 1, 32>}, {transform_indices = @transform_3, window_bounds = array<i64: 16, 32>}]} {
    %c0_i32 = arith.constant 0 : i32
    %0 = arith.cmpi eq, %arg2, %c0_i32 : i32
    %1 = arith.extui %0 : i1 to i32
    %c0_i32_0 = arith.constant 0 : i32
    %2 = arith.cmpi ne, %1, %c0_i32_0 : i32
    scf.if %2 {
      %cst_10 = arith.constant 0.000000e+00 : f32
      %12 = vector.broadcast %cst_10 : f32 to vector<16x32xf32>
      %c0_11 = arith.constant 0 : index
      %c0_12 = arith.constant 0 : index
      %13 = vector.load %arg7[%c0_11, %c0_12] : memref<16x32xf32, #tpu.memory_space<vmem>>, vector<16x32xf32>
      tpu.vector_store %arg7[%c0_11, %c0_12], %12 {strides = array<i32>} : memref<16x32xf32, #tpu.memory_space<vmem>>, vector<16x32xf32>,
    } else {
    }
    %c0 = arith.constant 0 : index
    %c0_1 = arith.constant 0 : index
    %3 = vector.load %arg7[%c0, %c0_1] : memref<16x32xf32, #tpu.memory_space<vmem>>, vector<16x32xf32>
    %c0_2 = arith.constant 0 : index
    %c0_3 = arith.constant 0 : index
    %4 = vector.load %arg3[%c0_2, %c0_3] : memref<16x32xf32, #tpu.memory_space<vmem>>, vector<16x32xf32>
    %c0_4 = arith.constant 0 : index
    %c0_5 = arith.constant 0 : index
    %5 = vector.load %arg4[%c0_4, %c0_5] : memref<32x32xf32, #tpu.memory_space<vmem>>, vector<32x32xf32>
    %cst = arith.constant dense<0.000000e+00> : vector<16x32xf32>
    %6 = tpu.matmul %4, %5, %cst {dimension_numbers = #tpu.dot_dimension_numbers<[1], [0], [0], [1], [0, 0, 1, 1], [], []>} : vector<16x32xf32>, vector<32x32xf32>, vector<16x32xf32> -> vector<16x32xf32>
    %7 = arith.addf %3, %6 : vector<16x32xf32>
    %c0_6 = arith.constant 0 : index
    %c0_7 = arith.constant 0 : index
    %8 = vector.load %arg7[%c0_6, %c0_7] : memref<16x32xf32, #tpu.memory_space<vmem>>, vector<16x32xf32>
    tpu.vector_store %arg7[%c0_6, %c0_7], %7 {strides = array<i32>} : memref<16x32xf32, #tpu.memory_space<vmem>>, vector<16x32xf32>,
    %c0_i32_8 = arith.constant 0 : i32
    %9 = arith.cmpi eq, %arg2, %c0_i32_8 : i32
    %10 = arith.extui %9 : i1 to i32
    %c0_i32_9 = arith.constant 0 : i32
    %11 = arith.cmpi ne, %10, %c0_i32_9 : i32
    scf.if %11 {
      %c0_10 = arith.constant 0 : index
      %c0_11 = arith.constant 0 : index
      %12 = vector.load %arg7[%c0_10, %c0_11] : memref<16x32xf32, #tpu.memory_space<vmem>>, vector<16x32xf32>
      %c0_12 = arith.constant 0 : index
      %c0_13 = arith.constant 0 : index
      %13 = vector.load %arg5[%c0_12, %c0_13] : memref<1x32xf32, #tpu.memory_space<vmem>>, vector<1x32xf32>
      %14 = vector.broadcast %13 : vector<1x32xf32> to vector<16x32xf32>
      %15 = arith.addf %12, %14 : vector<16x32xf32>
      %c0_14 = arith.constant 0 : index
      %c0_15 = arith.constant 0 : index
      %16 = vector.load %arg6[%c0_14, %c0_15] : memref<16x32xf32, #tpu.memory_space<vmem>>, vector<16x32xf32>
      tpu.vector_store %arg6[%c0_14, %c0_15], %15 {strides = array<i32>} : memref<16x32xf32, #tpu.memory_space<vmem>>, vector<16x32xf32>,
    } else {
    }
    return
  }
  func.func @transform_0(%arg0: i32, %arg1: i32, %arg2: i32) -> (i32, i32) {
    %c0_i32 = arith.constant 0 : i32
    return %arg0, %arg2 : i32, i32
  }
  func.func @transform_1(%arg0: i32, %arg1: i32, %arg2: i32) -> (i32, i32) {
    %c0_i32 = arith.constant 0 : i32
    return %arg2, %arg1 : i32, i32
  }
  func.func @transform_2(%arg0: i32, %arg1: i32, %arg2: i32) -> (i32, i32) {
    %c0_i32 = arith.constant 0 : i32
    %c0_i32_0 = arith.constant 0 : i32
    return %c0_i32, %arg1 : i32, i32
  }
  func.func @transform_3(%arg0: i32, %arg1: i32, %arg2: i32) -> (i32, i32) {
    %c0_i32 = arith.constant 0 : i32
    return %arg0, %arg1 : i32, i32
  }
}

</mosaic_0001>

<llo_original>
// kernel: tpu_custom_call.1
$region0: #{tpu_custom_call.1}
  #allocation0 [shape = 'u32[]', space=smem, size = 0x4, offset = 0x4, fixed_abs, tag = 'smem constant byte address 0x4 - core index']
  #allocation1 [shape = 'u32[72,128]{1,0:T(1,128)}', space=vmem, size = 0x9000, scoped, tag = 'internal scratch']
  #allocation2 [shape = 'f32[16,32]{1,0:T(8,128)}', space=vmem, size = 0x2000, scoped, tag = 'scratch operand']
  %s0 = inlined_call_operand.hbm [shape: f32[16,32], index: 0, kind: input, shape index: {}]
  %s1 = inlined_call_operand.hbm [shape: f32[32,32], index: 1, kind: input, shape index: {}]
  %s2 = inlined_call_operand.vmem [shape: f32[1,32], index: 2, kind: input, shape index: {}]
  %s3 = inlined_call_operand.hbm [shape: f32[16,32], index: 3, kind: output, shape index: {}]
  %s4 = sld [smem:[#allocation0]]
  $region38: #{tpu_custom_call.1} parent=0
    _
  %s6 = ssub.s32 1, %s4
  %s7 = scalar_select 0, %s6, %s4
  $region1: #{tpu_custom_call.1} parent=0
    #allocation3 [shape = 'u8[8192]{0}', space=vmem, size = 0x2000, scoped, tag = 'input window, operand 0, single buffered']
    #allocation4 [shape = 's32[1]{0}', space=sflag, size = 0x4, scoped, tag = 'scoped memory for tpu_custom_call.1']
    #allocation5 [shape = 's32[1]{0}', space=sflag, size = 0x4, scoped, tag = 'scoped memory for tpu_custom_call.1']
    #allocation6 [shape = 'u8[16384]{0}', space=vmem, size = 0x4000, scoped, tag = 'input window, operand 1, single buffered']
    #allocation7 [shape = 's32[1]{0}', space=sflag, size = 0x4, scoped, tag = 'scoped memory for tpu_custom_call.1']
    #allocation8 [shape = 'u8[8192]{0}', space=vmem, size = 0x2000, scoped, tag = 'output window, operand 0, single buffered']
    %8 = vsyncpa [#allocation4], 0
    %9 = vsyncpa [#allocation7], 0
    %10 = vsyncpa [#allocation5], 0
    // Predicated region
    $region2: #{tpu_custom_call.1} parent=1 // pred_check
      _
    $region3: #{tpu_custom_call.1} parent=1 // pred_check_branch
      %12 = sbr.rel (0) target = $region5
    $region4: #{tpu_custom_call.1} parent=1 // pred_region
      %14 = vsyncadd [#allocation4], 0
      %s15 = sshll.u32 %s0, 4
      %s16 = int_to_ptr.hbm [resolvable:$true] %s15
      %s17 = sshll.u32 [#allocation3], 4
      %s18 = int_to_ptr.vmem [resolvable:$true] %s17
      %23 = dma.hbm_to_vmem [thread:$0]  %s16, 256, %s18, [#allocation4], 128, 128, 8
    $region5: #{tpu_custom_call.1} parent=1 // pred_fallthru
      _
    // Predicated region
    $region6: #{tpu_custom_call.1} parent=1 // pred_check
      _
    $region7: #{tpu_custom_call.1} parent=1 // pred_check_branch
      %25 = sbr.rel (0) target = $region9
    $region8: #{tpu_custom_call.1} parent=1 // pred_region
      %27 = vsyncadd [#allocation7], 0
      %s28 = sshll.u32 %s1, 4
      %s29 = int_to_ptr.hbm [resolvable:$true] %s28
      %s30 = sshll.u32 [#allocation6], 4
      %s31 = int_to_ptr.vmem [resolvable:$true] %s30
      %36 = dma.hbm_to_vmem [thread:$0]  %s29, 512, %s31, [#allocation7], 128, 128, 8
    $region9: #{tpu_custom_call.1} parent=1 // pred_fallthru
      _
    // Predicated region
    $region10: #{tpu_custom_call.1} parent=1 // pred_check
      _
    $region11: #{tpu_custom_call.1} parent=1 // pred_check_branch
      %38 = sbr.rel (0) target = $region13
    $region12: #{tpu_custom_call.1} parent=1 // pred_region
      _
    $region13: #{tpu_custom_call.1} parent=1 // pred_fallthru
      _
    // Predicated region
    $region14: #{tpu_custom_call.1} parent=1 // pred_check
      _
    $region15: #{tpu_custom_call.1} parent=1 // pred_check_branch
      %40 = sbr.rel (0) target = $region17
    $region16: #{tpu_custom_call.1} parent=1 // pred_region
      %42 = dma.done [#allocation4], 256
    $region17: #{tpu_custom_call.1} parent=1 // pred_fallthru
      _
    // Predicated region
    $region18: #{tpu_custom_call.1} parent=1 // pred_check
      _
    $region19: #{tpu_custom_call.1} parent=1 // pred_check_branch
      %44 = sbr.rel (0) target = $region21
    $region20: #{tpu_custom_call.1} parent=1 // pred_region
      %46 = dma.done [#allocation7], 512
    $region21: #{tpu_custom_call.1} parent=1 // pred_fallthru
      _
    %p47 = scmp.eq.s32.totalorder 0, 0
    // Predicated region
    $region22: #{tpu_custom_call.1} parent=1 // pred_check
      %p48 = pneg %p47
    $region23: #{tpu_custom_call.1} parent=1 // pred_check_branch
      %50 = sbr.rel (%p48) target = $region25
    $region24: #{tpu_custom_call.1} parent=1 // pred_region
      %vm51 = vcmask 261120
      %52 = vst.msk [vmem:[#allocation2] sm:$0xff] %vm51, 0.0
      %53 = vst.msk [vmem:[#allocation2 + $0x8] sm:$0xff] %vm51, 0.0
    $region25: #{tpu_custom_call.1} parent=1 // pred_fallthru
      _
    %v54 = vld [vmem:[#allocation2] sm:$0xff]
    %v55 = vld [vmem:[#allocation2 + $0x8] sm:$0xff]
    %v56 = vld [vmem:[#allocation3] sm:$0xff]
    %v57 = vld [vmem:[#allocation3 + $0x8] sm:$0xff]
    %v58 = vld [vmem:[#allocation6] sm:$0xff]
    %v59 = vld [vmem:[#allocation6 + $0x8] sm:$0xff]
    %v60 = vld [vmem:[#allocation6 + $0x10] sm:$0xff]
    %v61 = vld [vmem:[#allocation6 + $0x18] sm:$0xff]
    %vm62 = vcmask 261120
    %v64 = vsel %vm62, %v56, 0
    %v67 = vsel %vm62, %v57, 0
    %69 = vmatpush.msra.mxu0 0.0
    %70 = vmatpush.msra.mxu0 0.0
    %71 = vmatpush.msra.mxu0 0.0
    %72 = vmatpush.msra.mxu0 0.0
    %73 = vmatpush.msra.mxu0 0.0
    %74 = vmatpush.msra.mxu0 0.0
    %75 = vmatpush.msra.mxu0 0.0
    %76 = vmatpush.msra.mxu0 0.0
    %77 = vmatpush.msra.mxu0 0.0
    %78 = vmatpush.msra.mxu0 0.0
    %79 = vmatpush.msra.mxu0 0.0
    %80 = vmatpush.msra.mxu0 0.0
    %81 = vmatpush.msra.mxu0 %v61
    %82 = vmatpush.msra.mxu0 %v60
    %83 = vmatpush.msra.mxu0 %v59
    %84 = vmatpush.msra.mxu0 %v58
    %85 = vmatmul.f32.gmra.mxu0 %v64
    %v86 = vpop.f32.mrf.mxu0
    %v87 = vadd.f32 0.0, %v86
    %88 = vmatmul.f32.gmra.mxu0 %v67
    %v89 = vpop.f32.mrf.mxu0
    %v90 = vadd.f32 0.0, %v89
    %91 = vdwg.mxu0
    %v92 = vadd.f32 %v54, %v87
    %v93 = vadd.f32 %v55, %v90
    %94 = vst.msk [vmem:[#allocation2] sm:$0xff] %vm62, %v92
    %95 = vst.msk [vmem:[#allocation2 + $0x8] sm:$0xff] %vm62, %v93
    // Predicated region
    $region26: #{tpu_custom_call.1} parent=1 // pred_check
      %p96 = pneg %p47
    $region27: #{tpu_custom_call.1} parent=1 // pred_check_branch
      %98 = sbr.rel (%p96) target = $region29
    $region28: #{tpu_custom_call.1} parent=1 // pred_region
      %v99 = vld [vmem:[#allocation2] sm:$0xff]
      %v100 = vld [vmem:[#allocation2 + $0x8] sm:$0xff]
      %v101 = vld [vmem:[%s2] sm:$0x1]
      %v103 = vperm.slane %v101, 0
      %v105 = vadd.f32 %v99, %v103
      %v106 = vadd.f32 %v100, %v103
      %107 = vst.msk [vmem:[#allocation8] sm:$0xff] %vm62, %v105
      %108 = vst.msk [vmem:[#allocation8 + $0x8] sm:$0xff] %vm62, %v106
    $region29: #{tpu_custom_call.1} parent=1 // pred_fallthru
      _
    // Predicated region
    $region30: #{tpu_custom_call.1} parent=1 // pred_check
      _
    $region31: #{tpu_custom_call.1} parent=1 // pred_check_branch
      %110 = sbr.rel (0) target = $region33
    $region32: #{tpu_custom_call.1} parent=1 // pred_region
      %112 = vsyncadd [#allocation5], 0
      %s113 = sshll.u32 [#allocation8], 4
      %s114 = int_to_ptr.vmem [resolvable:$true] %s113
      %s115 = sshll.u32 %s3, 4
      %s116 = int_to_ptr.hbm [resolvable:$true] %s115
      %121 = dma.vmem_to_hbm [thread:$0]  %s114, 256, %s116, [#allocation5], 128, 128, 8
    $region33: #{tpu_custom_call.1} parent=1 // pred_fallthru
      _
    // Predicated region
    $region34: #{tpu_custom_call.1} parent=1 // pred_check
      _
    $region35: #{tpu_custom_call.1} parent=1 // pred_check_branch
      %123 = sbr.rel (0) target = $region37
    $region36: #{tpu_custom_call.1} parent=1 // pred_region
      %125 = dma.done [#allocation5], 256
    $region37: #{tpu_custom_call.1} parent=1 // pred_fallthru
      _
    %126 = vsyncpa [#allocation4], 1
    %127 = vsyncpa [#allocation7], 1
    %128 = vsyncpa [#allocation5], 1

</llo_original>
